<compile_context>
chip_gen: v5e
topology: v5e:2x2
jax: 0.10.0
libtpu: 0.0.40
codegen_flags: <defaults>
</compile_context>

<pallas_src>
import jax
import jax.numpy as jnp
from jax.experimental import pallas as pl
from jax.experimental.pallas import tpu as pltpu


def _prealign_kernel(doc_ref, qry_ref, w_ref, b_ref, out_ref):
    nb, ld, e = doc_ref.shape
    lq = qry_ref.shape[1]
    h = w_ref.shape[1]

    doc = doc_ref[...]          # (nb, Ld, E)
    qry = qry_ref[...]          # (nb, Lq, E)
    w = w_ref[...]              # (E, H)
    b = b_ref[...]              # (1, H)

    # Shared projection + ReLU, fused over {doc, query} x batch -> one MXU matmul.
    # (leading-dim-only reshapes: last dim unchanged, no relayout)
    x = jnp.concatenate(
        [doc.reshape(nb * ld, e), qry.reshape(nb * lq, e)], axis=0)    # (nb*(Ld+Lq), E)
    proj = jnp.dot(x, w, preferred_element_type=jnp.float32) + b
    proj = jnp.maximum(proj, 0.0)
    doc_o = proj[: nb * ld].reshape(nb, ld, h)                          # (nb, Ld, H)
    qry_o = proj[nb * ld:].reshape(nb, lq, h)                           # (nb, Lq, H)

    # Attention scores: contract the last dims directly (trans_b on the MXU,
    # no explicit transpose of qry_o is materialized).
    s = jnp.einsum("bdh,bqh->bdq", doc_o, qry_o,
                   preferred_element_type=jnp.float32)                  # (nb, Ld, Lq)

    # Max-stable row softmax over Lq; denominator reciprocal on the EUP.
    s = s - jnp.max(s, axis=-1, keepdims=True)
    p = jnp.exp(s)
    p = p * pl.reciprocal(jnp.sum(p, axis=-1, keepdims=True), approx=True)

    # Weighted sum of the *raw* query embeddings (probabilities fed to the MXU in
    # the input dtype; f32 accumulation).
    out = jnp.einsum("bdq,bqe->bde", p.astype(qry.dtype), qry,
                     preferred_element_type=jnp.float32)                # (nb, Ld, E)
    out_ref[...] = out.astype(out_ref.dtype)


def _pick_batch_block(batch, max_nb=8):
    """Largest per-step batch block that divides B while leaving >= 2 grid steps
    (keeps both TensorCores busy on v7x / megacore parts)."""
    best = 1
    for nb in range(1, min(batch, max_nb) + 1):
        if batch % nb == 0 and batch // nb >= 2:
            best = nb
    return best


def prealign(doc_embed, query_embed, w, b, *, batch_block=None):
    """doc_embed [B,Ld,E], query_embed [B,Lq,E], w [E,H], b [H] -> [B,Ld,E]."""
    B, Ld, E = doc_embed.shape
    _, Lq, _ = query_embed.shape
    H = w.shape[1]

    nb = batch_block if batch_block is not None else _pick_batch_block(B)
    assert B % nb == 0, "batch block must divide batch"
    b2 = b.reshape(1, H)

    # Advisory cost for XLA's scheduler around this short custom call.
    flops = 2 * B * ((Ld + Lq) * E * H + Ld * Lq * H + Ld * Lq * E)
    bytes_accessed = (
        doc_embed.dtype.itemsize * (2 * doc_embed.size)        # doc in + out
        + query_embed.dtype.itemsize * query_embed.size
        + w.dtype.itemsize * (w.size + b.size)
    )
    cost = pl.CostEstimate(flops=flops,
                           transcendentals=B * Ld * Lq,
                           bytes_accessed=int(bytes_accessed))

    return pl.pallas_call(
        _prealign_kernel,
        out_shape=jax.ShapeDtypeStruct((B, Ld, E), doc_embed.dtype),
        grid_spec=pltpu.PrefetchScalarGridSpec(
            num_scalar_prefetch=0,
            grid=(B // nb,),
            in_specs=[
                pl.BlockSpec((nb, Ld, E), lambda i: (i, 0, 0)),
                pl.BlockSpec((nb, Lq, E), lambda i: (i, 0, 0)),
                pl.BlockSpec((E, H), lambda i: (0, 0)),
                pl.BlockSpec((1, H), lambda i: (0, 0)),
            ],
            out_specs=pl.BlockSpec((nb, Ld, E), lambda i: (i, 0, 0)),
        ),
        compiler_params=pltpu.CompilerParams(
            dimension_semantics=("parallel",)),
        cost_estimate=cost,
    )(doc_embed, query_embed, w, b2)


def prealign_ref(doc_embed, query_embed, w, b):
    # Pure-JAX reference mirroring the PyTorch forward.
    doc_o = jax.nn.relu(jnp.einsum("ble,eh->blh", doc_embed, w) + b)
    qry_o = jax.nn.relu(jnp.einsum("ble,eh->blh", query_embed, w) + b)
    scores = jnp.einsum("bdh,bqh->bdq", doc_o, qry_o)
    scores = jax.nn.softmax(scores, axis=-1)
    return jnp.einsum("bdq,bqe->bde", scores, query_embed)


if __name__ == "__main__":
    # Small shapes consistent with the module's forward.
    B, Ld, Lq = 2, 16, 8
    E, H = 32, 32   # embed_dim = 32, prealign_hidden_size = 32

    key = jax.random.PRNGKey(0)
    k_doc, k_qry, k_w, k_b = jax.random.split(key, 4)

    doc_embed = jax.random.normal(k_doc, (B, Ld, E), dtype=jnp.float32)
    query_embed = jax.random.normal(k_qry, (B, Lq, E), dtype=jnp.float32)

    # Deterministic nn.Linear-style init: U(-1/sqrt(E), 1/sqrt(E)).
    bound = 1.0 / (E ** 0.5)
    w = jax.random.uniform(k_w, (E, H), minval=-bound, maxval=bound,
                           dtype=jnp.float32)
    b = jax.random.uniform(k_b, (H,), minval=-bound, maxval=bound,
                           dtype=jnp.float32)

    out = jax.block_until_ready(prealign(doc_embed, query_embed, w, b))
    ref = prealign_ref(doc_embed, query_embed, w, b)

    assert out.shape == (B, Ld, E)
    # Tolerance accounts for the EUP approx-reciprocal softmax denominator.
    assert jnp.allclose(out, ref, atol=2e-3, rtol=2e-3), "mismatch vs reference"

    print("KERNEL_OK")
</pallas_src>

<mosaic_0001>
module attributes {stable_mosaic.version = 11 : i64} {
  func.func @_prealign_kernel(%arg0: i32, %arg1: memref<1x16x32xf32, #tpu.memory_space<vmem>>, %arg2: memref<1x8x32xf32, #tpu.memory_space<vmem>>, %arg3: memref<32x32xf32, #tpu.memory_space<vmem>>, %arg4: memref<1x32xf32, #tpu.memory_space<vmem>>, %arg5: memref<1x16x32xf32, #tpu.memory_space<vmem>>) attributes {dimension_semantics = [#tpu.dimension_semantics<parallel>], iteration_bounds = array<i64: 2>, scalar_prefetch = 0 : i64, scratch_operands = 0 : i64, tpu.core_type = #tpu.core_type<tc>, window_params = [{transform_indices = @transform_0, window_bounds = array<i64: 1, 16, 32>}, {transform_indices = @transform_1, window_bounds = array<i64: 1, 8, 32>}, {pipeline_mode = #tpu.pipeline_mode<synchronous>, transform_indices = @transform_2, window_bounds = array<i64: 32, 32>}, {pipeline_mode = #tpu.pipeline_mode<synchronous>, transform_indices = @transform_3, window_bounds = array<i64: 1, 32>}, {transform_indices = @transform_4, window_bounds = array<i64: 1, 16, 32>}]} {
    %c0 = arith.constant 0 : index
    %c0_0 = arith.constant 0 : index
    %c0_1 = arith.constant 0 : index
    %0 = vector.load %arg1[%c0, %c0_0, %c0_1] : memref<1x16x32xf32, #tpu.memory_space<vmem>>, vector<1x16x32xf32>
    %c0_2 = arith.constant 0 : index
    %c0_3 = arith.constant 0 : index
    %c0_4 = arith.constant 0 : index
    %1 = vector.load %arg2[%c0_2, %c0_3, %c0_4] : memref<1x8x32xf32, #tpu.memory_space<vmem>>, vector<1x8x32xf32>
    %c0_5 = arith.constant 0 : index
    %c0_6 = arith.constant 0 : index
    %2 = vector.load %arg3[%c0_5, %c0_6] : memref<32x32xf32, #tpu.memory_space<vmem>>, vector<32x32xf32>
    %c0_7 = arith.constant 0 : index
    %c0_8 = arith.constant 0 : index
    %3 = vector.load %arg4[%c0_7, %c0_8] : memref<1x32xf32, #tpu.memory_space<vmem>>, vector<1x32xf32>
    %4 = vector.shape_cast %0 : vector<1x16x32xf32> to vector<16x32xf32>
    %5 = vector.shape_cast %1 : vector<1x8x32xf32> to vector<8x32xf32>
    %6 = tpu.concatenate %4, %5 in 0 : vector<16x32xf32>, vector<8x32xf32> -> vector<24x32xf32>
    %cst = arith.constant dense<0.000000e+00> : vector<24x32xf32>
    %7 = tpu.matmul %6, %2, %cst {dimension_numbers = #tpu.dot_dimension_numbers<[1], [0], [0], [1], [0, 0, 1, 1], [], []>} : vector<24x32xf32>, vector<32x32xf32>, vector<24x32xf32> -> vector<24x32xf32>
    %8 = vector.broadcast %3 : vector<1x32xf32> to vector<24x32xf32>
    %9 = arith.addf %7, %8 : vector<24x32xf32>
    %cst_9 = arith.constant 0.000000e+00 : f32
    %10 = vector.broadcast %cst_9 : f32 to vector<24x32xf32>
    %11 = arith.maximumf %9, %10 : vector<24x32xf32>
    %12 = vector.extract_strided_slice %11 {offsets = [0, 0], sizes = [16, 32], strides = [1, 1]} : vector<24x32xf32> to vector<16x32xf32>
    %13 = vector.shape_cast %12 : vector<16x32xf32> to vector<1x16x32xf32>
    %14 = vector.extract_strided_slice %11 {offsets = [16, 0], sizes = [8, 32], strides = [1, 1]} : vector<24x32xf32> to vector<8x32xf32>
    %15 = vector.shape_cast %14 : vector<8x32xf32> to vector<1x8x32xf32>
    "tpu.trace_start"() <{level = 10 : i32, message = "bdh,bqh->bdq"}> : () -> ()
    %cst_10 = arith.constant dense<0.000000e+00> : vector<1x16x8xf32>
    %16 = tpu.matmul %13, %15, %cst_10 {dimension_numbers = #tpu.dot_dimension_numbers<[2], [2], [1], [1], [0, 0, 0, 1, 1, 1], [0], [0]>} : vector<1x16x32xf32>, vector<1x8x32xf32>, vector<1x16x8xf32> -> vector<1x16x8xf32>
    "tpu.trace_stop"() : () -> ()
    %cst_11 = arith.constant dense<0xFF800000> : vector<1x16xf32>
    %17 = vector.multi_reduction <maximumf>, %16, %cst_11 [2] : vector<1x16x8xf32> to vector<1x16xf32>
    %18 = vector.shape_cast %17 : vector<1x16xf32> to vector<1x16x1xf32>
    %19 = vector.broadcast %18 : vector<1x16x1xf32> to vector<1x16x8xf32>
    %20 = arith.subf %16, %19 : vector<1x16x8xf32>
    %21 = math.exp %20 : vector<1x16x8xf32>
    %cst_12 = arith.constant dense<0.000000e+00> : vector<1x16xf32>
    %22 = vector.multi_reduction <add>, %21, %cst_12 [2] : vector<1x16x8xf32> to vector<1x16xf32>
    %23 = vector.shape_cast %22 : vector<1x16xf32> to vector<1x16x1xf32>
    %24 = tpu.reciprocal %23 {approx = true} : vector<1x16x1xf32> -> vector<1x16x1xf32>
    %25 = vector.broadcast %24 : vector<1x16x1xf32> to vector<1x16x8xf32>
    %26 = arith.mulf %21, %25 : vector<1x16x8xf32>
    "tpu.trace_start"() <{level = 10 : i32, message = "bdq,bqe->bde"}> : () -> ()
    %cst_13 = arith.constant dense<0.000000e+00> : vector<1x16x32xf32>
    %27 = tpu.matmul %26, %1, %cst_13 {dimension_numbers = #tpu.dot_dimension_numbers<[2], [1], [1], [2], [0, 0, 0, 1, 1, 2], [0], [0]>} : vector<1x16x8xf32>, vector<1x8x32xf32>, vector<1x16x32xf32> -> vector<1x16x32xf32>
    "tpu.trace_stop"() : () -> ()
    %c0_14 = arith.constant 0 : index
    %c0_15 = arith.constant 0 : index
    %c0_16 = arith.constant 0 : index
    %28 = vector.load %arg5[%c0_14, %c0_15, %c0_16] : memref<1x16x32xf32, #tpu.memory_space<vmem>>, vector<1x16x32xf32>
    tpu.vector_store %arg5[%c0_14, %c0_15, %c0_16], %27 {strides = array<i32>} : memref<1x16x32xf32, #tpu.memory_space<vmem>>, vector<1x16x32xf32>,
    return
  }
  func.func @transform_0(%arg0: i32) -> (i32, i32, i32) {
    %c0_i32 = arith.constant 0 : i32
    %c0_i32_0 = arith.constant 0 : i32
    %c0_i32_1 = arith.constant 0 : i32
    return %arg0, %c0_i32, %c0_i32_0 : i32, i32, i32
  }
  func.func @transform_1(%arg0: i32) -> (i32, i32, i32) {
    %c0_i32 = arith.constant 0 : i32
    %c0_i32_0 = arith.constant 0 : i32
    %c0_i32_1 = arith.constant 0 : i32
    return %arg0, %c0_i32, %c0_i32_0 : i32, i32, i32
  }
  func.func @transform_2(%arg0: i32) -> (i32, i32) {
    %c0_i32 = arith.constant 0 : i32
    %c0_i32_0 = arith.constant 0 : i32
    %c0_i32_1 = arith.constant 0 : i32
    return %c0_i32, %c0_i32_0 : i32, i32
  }
  func.func @transform_3(%arg0: i32) -> (i32, i32) {
    %c0_i32 = arith.constant 0 : i32
    %c0_i32_0 = arith.constant 0 : i32
    %c0_i32_1 = arith.constant 0 : i32
    return %c0_i32, %c0_i32_0 : i32, i32
  }
  func.func @transform_4(%arg0: i32) -> (i32, i32, i32) {
    %c0_i32 = arith.constant 0 : i32
    %c0_i32_0 = arith.constant 0 : i32
    %c0_i32_1 = arith.constant 0 : i32
    return %arg0, %c0_i32, %c0_i32_0 : i32, i32, i32
  }
}

</mosaic_0001>

<llo_original>
// kernel: tpu_custom_call.1
$region0: #{tpu_custom_call.1}
  #allocation0 [shape = 'u32[]', space=smem, size = 0x4, offset = 0x4, fixed_abs, tag = 'smem constant byte address 0x4 - core index']
  #allocation1 [shape = 'u32[72,128]{1,0:T(1,128)}', space=vmem, size = 0x9000, scoped, tag = 'internal scratch']
  %s0 = inlined_call_operand.hbm [shape: f32[2,16,32], index: 0, kind: input, shape index: {}]
  %s1 = inlined_call_operand.hbm [shape: f32[2,8,32], index: 1, kind: input, shape index: {}]
  %s2 = inlined_call_operand.hbm [shape: f32[32,32], index: 2, kind: input, shape index: {}]
  %s3 = inlined_call_operand.vmem [shape: f32[1,32], index: 3, kind: input, shape index: {}]
  %s4 = inlined_call_operand.hbm [shape: f32[2,16,32], index: 4, kind: output, shape index: {}]
  %s5 = sld [smem:[#allocation0]]
  $region61: #{tpu_custom_call.1} parent=0
    _
  %s7 = ssub.s32 1, %s5
  %s8 = scalar_select 0, %s7, %s5
  $region1: #{tpu_custom_call.1} parent=0
    #allocation2 [shape = 'u8[16384]{0}', space=vmem, size = 0x4000, scoped, tag = 'input window, operand 0']
    #allocation3 [shape = 's32[2]{0}', space=sflag, size = 0x8, scoped, tag = 'scoped memory for tpu_custom_call.1']
    #allocation4 [shape = 's32[2]{0}', space=sflag, size = 0x8, scoped, tag = 'scoped memory for tpu_custom_call.1']
    #allocation5 [shape = 'u8[8192]{0}', space=vmem, size = 0x2000, scoped, tag = 'input window, operand 1']
    #allocation6 [shape = 's32[2]{0}', space=sflag, size = 0x8, scoped, tag = 'scoped memory for tpu_custom_call.1']
    #allocation7 [shape = 'u8[16384]{0}', space=vmem, size = 0x4000, scoped, tag = 'input window, operand 2, single buffered']
    #allocation8 [shape = 'u8[16384]{0}', space=vmem, size = 0x4000, scoped, tag = 'output window, operand 0']
    %9 = vsyncpa [#allocation3], 0
    %s10 = scalar_lea.sflag [#allocation3], 1
    %11 = vsyncpa %s10, 0
    %12 = vsyncpa [#allocation6], 0
    %s13 = scalar_lea.sflag [#allocation6], 1
    %14 = vsyncpa %s13, 0
    %15 = vsyncpa [#allocation4], 0
    %s16 = scalar_lea.sflag [#allocation4], 1
    %17 = vsyncpa %s16, 0
    loop: start=0, step=1, limit=4
    $region2: #{tpu_custom_call.1} parent=1 // loop_pre_header
      _
    $region3: #{tpu_custom_call.1} parent=1 // loop_header
      %s19 = sphi 0, %s23
      %p20 = scmp.ge.s32.totalorder %s19, 4
      %s29 = sphi 0, %s31
      %s32 = sphi 0, %s29
      %s33 = sphi 0, %s32
      %s49 = sphi 0, %s33
      %s55 = sphi 0, %s57
      %s58 = sphi 0, %s55
      %s59 = sphi 0, %s58
      %s75 = sphi 0, %s59
      %s79 = sphi 0, %s79
      %s81 = sphi 0, %s79
      %s82 = sphi 0, %s81
      %s96 = sphi 0, %s82
      %s100 = sphi 0, %s100
      %s102 = sphi 0, %s100
      %s103 = sphi 0, %s102
      %s117 = sphi 0, %s103
      %s123 = sphi 0, %s125
      %s126 = sphi 0, %s123
      %s127 = sphi 0, %s126
      %s143 = sphi 0, %s127
    $region4: #{tpu_custom_call.1} parent=1 // loop_header_branch
      %22 = sbr.rel (%p20) target = $region8
    $region5: #{tpu_custom_call.1} parent=1 // loop_body
      %s24 = ssub.s32 %s19, 1
      %s25 = ssub.s32 %s19, 2
      %s26 = sadd.s32 %s19, 1
      %s27 = ssub.s32 %s19, %s26
      %p28 = scmp.eq.s32.totalorder %s27, 0
      %s30 = sadd.s32 %s29, 1
      %s31 = scalar_select %p28, %s29, %s30
      %p34 = pneg %p28
      %p35 = scmp.eq.s32.totalorder %s19, 1
      %p36 = por %p34, %p35
      %p37 = scmp.ne.s32.totalorder %s29, %s32
      %p38 = scmp.eq.s32.totalorder %s19, 0
      %p39 = por %p37, %p38
      %p40 = scmp.ne.s32.totalorder %s29, %s32
      %p41 = scmp.eq.s32.totalorder %s24, 1
      %p42 = por %p40, %p41
      %p43 = scmp.ne.s32.totalorder %s32, %s33
      %p44 = scmp.eq.s32.totalorder %s24, 0
      %p45 = por %p43, %p44
      %p46 = scmp.ne.s32.totalorder %s32, %s33
      %p47 = scmp.eq.s32.totalorder %s25, 1
      %p48 = por %p46, %p47
      %p50 = scmp.ne.s32.totalorder %s33, %s49
      %p51 = scmp.eq.s32.totalorder %s25, 0
      %p52 = por %p50, %p51
      %s53 = ssub.s32 %s19, %s26
      %p54 = scmp.eq.s32.totalorder %s53, 0
      %s56 = sadd.s32 %s55, 1
      %s57 = scalar_select %p54, %s55, %s56
      %p60 = pneg %p54
      %p61 = scmp.eq.s32.totalorder %s19, 1
      %p62 = por %p60, %p61
      %p63 = scmp.ne.s32.totalorder %s55, %s58
      %p64 = scmp.eq.s32.totalorder %s19, 0
      %p65 = por %p63, %p64
      %p66 = scmp.ne.s32.totalorder %s55, %s58
      %p67 = scmp.eq.s32.totalorder %s24, 1
      %p68 = por %p66, %p67
      %p69 = scmp.ne.s32.totalorder %s58, %s59
      %p70 = scmp.eq.s32.totalorder %s24, 0
      %p71 = por %p69, %p70
      %p72 = scmp.ne.s32.totalorder %s58, %s59
      %p73 = scmp.eq.s32.totalorder %s25, 1
      %p74 = por %p72, %p73
      %p76 = scmp.ne.s32.totalorder %s59, %s75
      %p77 = scmp.eq.s32.totalorder %s25, 0
      %p78 = por %p76, %p77
      %s80 = sadd.s32 %s79, 1
      %p83 = scmp.eq.s32.totalorder %s19, 1
      %p84 = scmp.ne.s32.totalorder %s79, %s81
      %p85 = scmp.eq.s32.totalorder %s19, 0
      %p86 = por %p84, %p85
      %p87 = scmp.ne.s32.totalorder %s79, %s81
      %p88 = scmp.eq.s32.totalorder %s24, 1
      %p89 = por %p87, %p88
      %p90 = scmp.ne.s32.totalorder %s81, %s82
      %p91 = scmp.eq.s32.totalorder %s24, 0
      %p92 = por %p90, %p91
      %p93 = scmp.ne.s32.totalorder %s81, %s82
      %p94 = scmp.eq.s32.totalorder %s25, 1
      %p95 = por %p93, %p94
      %p97 = scmp.ne.s32.totalorder %s82, %s96
      %p98 = scmp.eq.s32.totalorder %s25, 0
      %p99 = por %p97, %p98
      %s101 = sadd.s32 %s100, 1
      %p104 = scmp.eq.s32.totalorder %s19, 1
      %p105 = scmp.ne.s32.totalorder %s100, %s102
      %p106 = scmp.eq.s32.totalorder %s19, 0
      %p107 = por %p105, %p106
      %p108 = scmp.ne.s32.totalorder %s100, %s102
      %p109 = scmp.eq.s32.totalorder %s24, 1
      %p110 = por %p108, %p109
      %p111 = scmp.ne.s32.totalorder %s102, %s103
      %p112 = scmp.eq.s32.totalorder %s24, 0
      %p113 = por %p111, %p112
      %p114 = scmp.ne.s32.totalorder %s102, %s103
      %p115 = scmp.eq.s32.totalorder %s25, 1
      %p116 = por %p114, %p115
      %p118 = scmp.ne.s32.totalorder %s103, %s117
      %p119 = scmp.eq.s32.totalorder %s25, 0
      %p120 = por %p118, %p119
      %s121 = ssub.s32 %s19, %s26
      %p122 = scmp.eq.s32.totalorder %s121, 0
      %s124 = sadd.s32 %s123, 1
      %s125 = scalar_select %p122, %s123, %s124
      %p128 = pneg %p122
      %p129 = scmp.eq.s32.totalorder %s19, 1
      %p130 = por %p128, %p129
      %p131 = scmp.ne.s32.totalorder %s123, %s126
      %p132 = scmp.eq.s32.totalorder %s19, 0
      %p133 = por %p131, %p132
      %p134 = scmp.ne.s32.totalorder %s123, %s126
      %p135 = scmp.eq.s32.totalorder %s24, 1
      %p136 = por %p134, %p135
      %p137 = scmp.ne.s32.totalorder %s126, %s127
      %p138 = scmp.eq.s32.totalorder %s24, 0
      %p139 = por %p137, %p138
      %p140 = scmp.ne.s32.totalorder %s126, %s127
      %p141 = scmp.eq.s32.totalorder %s25, 1
      %p142 = por %p140, %p141
      %p144 = scmp.ne.s32.totalorder %s127, %s143
      %p145 = scmp.eq.s32.totalorder %s25, 0
      %p146 = por %p144, %p145
      %p147 = scmp.le.s32.totalorder 1, %s19
      %p148 = scmp.lt.s32.totalorder %s19, 3
      %p149 = pnand %p147, %p148
      %p150 = pneg %p149
      // Predicated region
      $region9: #{tpu_custom_call.1} parent=5 // pred_check
        _
      $region10: #{tpu_custom_call.1} parent=5 // pred_check_branch
        %152 = sbr.rel (%p149) target = $region12
      $region11: #{tpu_custom_call.1} parent=5 // pred_region
        %s153 = ssub.s32 %s19, 1
        // Predicated region
        $region13: #{tpu_custom_call.1} parent=11 // pred_check
          %p154 = pneg %p92
        $region14: #{tpu_custom_call.1} parent=11 // pred_check_branch
          %156 = sbr.rel (%p154) target = $region16
        $region15: #{tpu_custom_call.1} parent=11 // pred_region
          %158 = vsyncadd [#allocation6], 0
          %s159 = sshll.u32 %s2, 4
          %s160 = int_to_ptr.hbm [resolvable:$true] %s159
          %s161 = sshll.u32 [#allocation7], 4
          %s162 = int_to_ptr.vmem [resolvable:$true] %s161
          %167 = dma.hbm_to_vmem [thread:$0]  %s160, 512, %s162, [#allocation6], 128, 128, 8
        $region16: #{tpu_custom_call.1} parent=11 // pred_fallthru
          _
        // Predicated region
        $region17: #{tpu_custom_call.1} parent=11 // pred_check
          %p168 = pneg %p113
        $region18: #{tpu_custom_call.1} parent=11 // pred_check_branch
          %170 = sbr.rel (%p168) target = $region20
        $region19: #{tpu_custom_call.1} parent=11 // pred_region
          _
        $region20: #{tpu_custom_call.1} parent=11 // pred_fallthru
          _
      $region12: #{tpu_custom_call.1} parent=5 // pred_fallthru
        _
      %p171 = scmp.lt.s32.totalorder %s19, 2
      // Predicated region
      $region21: #{tpu_custom_call.1} parent=5 // pred_check
        %p172 = pneg %p171
      $region22: #{tpu_custom_call.1} parent=5 // pred_check_branch
        %174 = sbr.rel (%p172) target = $region24
      $region23: #{tpu_custom_call.1} parent=5 // pred_region
        // Predicated region
        $region25: #{tpu_custom_call.1} parent=23 // pred_check
          %p175 = pneg %p39
        $region26: #{tpu_custom_call.1} parent=23 // pred_check_branch
          %177 = sbr.rel (%p175) target = $region28
        $region27: #{tpu_custom_call.1} parent=23 // pred_region
          %s178 = sand.u32 %s29, 1
          %s179 = scalar_lea.sflag [#allocation3], %s178
          %s180 = sand.u32 %s29, 1
          %s181 = smul.addr %s180, 16
          %s182 = scalar_lea.vmem [#allocation2], %s181
          %184 = vsyncadd %s179, 0
          %s185 = smul.addr %s19, 2
          %s186 = smul.addr %s185, 8
          %s187 = scalar_lea.hbm %s0, %s186
          %s188 = sshll.u32 %s187, 4
          %s189 = int_to_ptr.hbm [resolvable:$true] %s188
          %s190 = sshll.u32 %s182, 4
          %s191 = int_to_ptr.vmem [resolvable:$true] %s190
          %196 = dma.hbm_to_vmem [thread:$0]  %s189, 256, %s191, %s179, 128, 128, 8
        $region28: #{tpu_custom_call.1} parent=23 // pred_fallthru
          _
        // Predicated region
        $region29: #{tpu_custom_call.1} parent=23 // pred_check
          %p197 = pneg %p65
        $region30: #{tpu_custom_call.1} parent=23 // pred_check_branch
          %199 = sbr.rel (%p197) target = $region32
        $region31: #{tpu_custom_call.1} parent=23 // pred_region
          %s200 = sand.u32 %s19, 1
          %s201 = scalar_lea.sflag [#allocation6], %s200
          %s202 = sand.u32 %s55, 1
          %s203 = smul.addr %s202, 8
          %s204 = scalar_lea.vmem [#allocation5], %s203
          %206 = vsyncadd %s201, 0
          %s207 = smul.addr %s19, 8
          %s208 = scalar_lea.hbm %s1, %s207
          %s210 = sshll.u32 %s208, 4
          %s211 = int_to_ptr.hbm [resolvable:$true] %s210
          %s212 = sshll.u32 %s204, 4
          %s213 = int_to_ptr.vmem [resolvable:$true] %s212
          %215 = dma.hbm_to_vmem [thread:$0]  %s211, 128, %s213, %s201
        $region32: #{tpu_custom_call.1} parent=23 // pred_fallthru
          _
      $region24: #{tpu_custom_call.1} parent=5 // pred_fallthru
        _
      %p216 = scmp.le.s32.totalorder 1, %s19
      %p217 = scmp.lt.s32.totalorder %s19, 3
      %p218 = pnand %p216, %p217
      %p219 = pneg %p218
      // Predicated region
      $region33: #{tpu_custom_call.1} parent=5 // pred_check
        _
      $region34: #{tpu_custom_call.1} parent=5 // pred_check_branch
        %221 = sbr.rel (%p218) target = $region36
      $region35: #{tpu_custom_call.1} parent=5 // pred_region
        %s222 = ssub.s32 %s19, 1
        %s223 = sand.u32 %s32, 1
        %s224 = scalar_lea.sflag [#allocation3], %s223
        %s225 = sand.u32 %s32, 1
        %s226 = smul.addr %s225, 16
        %s227 = scalar_lea.vmem [#allocation2], %s226
        // Predicated region
        $region37: #{tpu_custom_call.1} parent=35 // pred_check
          %p228 = pneg %p45
        $region38: #{tpu_custom_call.1} parent=35 // pred_check_branch
          %230 = sbr.rel (%p228) target = $region40
        $region39: #{tpu_custom_call.1} parent=35 // pred_region
          %232 = dma.done %s224, 256
        $region40: #{tpu_custom_call.1} parent=35 // pred_fallthru
          _
        %s233 = sand.u32 %s24, 1
        %s234 = scalar_lea.sflag [#allocation6], %s233
        %s235 = sand.u32 %s58, 1
        %s236 = smul.addr %s235, 8
        %s237 = scalar_lea.vmem [#allocation5], %s236
        // Predicated region
        $region41: #{tpu_custom_call.1} parent=35 // pred_check
          %p238 = pneg %p71
        $region42: #{tpu_custom_call.1} parent=35 // pred_check_branch
          %240 = sbr.rel (%p238) target = $region44
        $region43: #{tpu_custom_call.1} parent=35 // pred_region
          %242 = dma.done %s234, 128
        $region44: #{tpu_custom_call.1} parent=35 // pred_fallthru
          _
        // Predicated region
        $region45: #{tpu_custom_call.1} parent=35 // pred_check
          %p243 = pneg %p92
        $region46: #{tpu_custom_call.1} parent=35 // pred_check_branch
          %245 = sbr.rel (%p243) target = $region48
        $region47: #{tpu_custom_call.1} parent=35 // pred_region
          %247 = dma.done [#allocation6], 512
        $region48: #{tpu_custom_call.1} parent=35 // pred_fallthru
          _
        %s248 = sand.u32 %s32, 1
        %s249 = scalar_lea.sflag [#allocation3], %s248
        %s250 = sand.u32 %s32, 1
        %s251 = smul.addr %s250, 16
        %s252 = scalar_lea.vmem [#allocation2], %s251
        %p253 = pneg %p45
        %p254 = pneg %p42
        %s255 = sand.u32 %s24, 1
        %s256 = scalar_lea.sflag [#allocation6], %s255
        %s257 = sand.u32 %s58, 1
        %s258 = smul.addr %s257, 8
        %s259 = scalar_lea.vmem [#allocation5], %s258
        %p260 = pneg %p71
        %p261 = pneg %p68
        %p262 = pneg %p92
        %p263 = pneg %p89
        %p264 = pneg %p113
        %p265 = pneg %p110
        %p266 = pneg %p139
        %p267 = pneg %p136
        %s268 = sand.u32 %s126, 1
        %s269 = scalar_lea.sflag [#allocation4], %s268
        %s270 = sand.u32 %s126, 1
        %s271 = smul.addr %s270, 16
        %s272 = scalar_lea.vmem [#allocation8], %s271
        %v273 = vld [vmem:[%s227] sm:$0xff]
        %v274 = vld [vmem:[%s227 + $0x8] sm:$0xff]
        %v275 = vld [vmem:[%s237] sm:$0xff]
        %v276 = vld [vmem:[#allocation7] sm:$0xff]
        %v277 = vld [vmem:[#allocation7 + $0x8] sm:$0xff]
        %v278 = vld [vmem:[#allocation7 + $0x10] sm:$0xff]
        %v279 = vld [vmem:[#allocation7 + $0x18] sm:$0xff]
        %v280 = vld [vmem:[%s3] sm:$0x1]
        %v282 = vperm.slane %v280, 0
        %vm284 = vcmask 261120
        %v286 = vsel %vm284, %v273, 0
        %v289 = vsel %vm284, %v274, 0
        %v292 = vsel %vm284, %v275, 0
        %294 = vmatpush.msra.mxu0 0.0
        %295 = vmatpush.msra.mxu0 0.0
        %296 = vmatpush.msra.mxu0 0.0
        %297 = vmatpush.msra.mxu0 0.0
        %298 = vmatpush.msra.mxu0 0.0
        %299 = vmatpush.msra.mxu0 0.0
        %300 = vmatpush.msra.mxu0 0.0
        %301 = vmatpush.msra.mxu0 0.0
        %302 = vmatpush.msra.mxu0 0.0
        %303 = vmatpush.msra.mxu0 0.0
        %304 = vmatpush.msra.mxu0 0.0
        %305 = vmatpush.msra.mxu0 0.0
        %306 = vmatpush.msra.mxu0 %v279
        %307 = vmatpush.msra.mxu0 %v278
        %308 = vmatpush.msra.mxu0 %v277
        %309 = vmatpush.msra.mxu0 %v276
        %310 = vmatmul.f32.gmra.mxu0 %v286
        %v311 = vpop.f32.mrf.mxu0
        %v312 = vadd.f32 %v282, %v311
        %313 = vmatmul.f32.gmra.mxu0 %v289
        %v314 = vpop.f32.mrf.mxu0
        %v315 = vadd.f32 %v282, %v314
        %316 = vmatmul.f32.gmra.mxu0 %v292
        %v317 = vpop.f32.mrf.mxu0
        %v318 = vadd.f32 %v282, %v317
        %319 = vdwg.mxu0
        %v320 = vmax.f32 %v312, 0.0
        %v321 = vmax.f32 %v315, 0.0
        %v322 = vmax.f32 %v318, 0.0
        %v324 = vsel %vm284, %v320, 0
        %v327 = vsel %vm284, %v321, 0
        %v330 = vsel %vm284, %v322, 0
        %332 = vmatpush.xpose.msra.mxu0 0.0
        %333 = vmatpush.xpose.msra.mxu0 0.0
        %334 = vmatpush.xpose.msra.mxu0 0.0
        %335 = vmatpush.xpose.msra.mxu0 0.0
        %336 = vmatpush.xpose.msra.mxu0 0.0
        %337 = vmatpush.xpose.msra.mxu0 0.0
        %338 = vmatpush.xpose.msra.mxu0 0.0
        %339 = vmatpush.xpose.msra.mxu0 0.0
        %340 = vmatpush.xpose.msra.mxu0 0.0
        %341 = vmatpush.xpose.msra.mxu0 0.0
        %342 = vmatpush.xpose.msra.mxu0 0.0
        %343 = vmatpush.xpose.msra.mxu0 0.0
        %344 = vmatpush.xpose.msra.mxu0 0.0
        %345 = vmatpush.xpose.msra.mxu0 0.0
        %346 = vmatpush.xpose.msra.mxu0 0.0
        %347 = vmatpush.xpose.msra.mxu0 %v330
        %348 = vmatmul.f32.gmra.mxu0 %v324
        %v349 = vpop.f32.mrf.mxu0
        %v350 = vadd.f32 0.0, %v349
        %351 = vmatmul.f32.gmra.mxu0 %v327
        %v352 = vpop.f32.mrf.mxu0
        %v353 = vadd.f32 0.0, %v352
        %354 = vdwg.mxu0
        %vm355 = vcmask 64512
        %v356 = vsel %vm355, %v350, -inf
        %357 = vmax.xlane.f32.xlu0 %v356
        %v358 = vpop.xlane.xlu0 %357
        %v359 = vsel %vm355, %v353, -inf
        %360 = vmax.xlane.f32.xlu0 %v359
        %v361 = vpop.xlane.xlu0 %360
        %v362 = vsub.f32 %v350, %v358
        %v363 = vsub.f32 %v353, %v361
        %v364 = vmul.f32 %v362, 1.442695
        %v365 = vpow.pop %v364
        %v366 = vmul.f32 %v363, 1.442695
        %v367 = vpow.pop %v366
        %v368 = vsel %vm355, %v365, 0.0
        %369 = vadd.xlane.f32.xlu0 %v368
        %v370 = vpop.xlane.xlu0 %369
        %v371 = vsel %vm355, %v367, 0.0
        %372 = vadd.xlane.f32.xlu0 %v371
        %v373 = vpop.xlane.xlu0 %372
        %v374 = vrcp.pop %v370
        %v375 = vrcp.pop %v373
        %v376 = vmul.f32 %v365, %v374
        %v377 = vmul.f32 %v367, %v375
        %v379 = vsel %vm355, %v376, 0
        %v382 = vsel %vm355, %v377, 0
        %384 = vmatpush.msra.mxu0 0.0
        %385 = vmatpush.msra.mxu0 0.0
        %386 = vmatpush.msra.mxu0 0.0
        %387 = vmatpush.msra.mxu0 0.0
        %388 = vmatpush.msra.mxu0 0.0
        %389 = vmatpush.msra.mxu0 0.0
        %390 = vmatpush.msra.mxu0 0.0
        %391 = vmatpush.msra.mxu0 0.0
        %392 = vmatpush.msra.mxu0 0.0
        %393 = vmatpush.msra.mxu0 0.0
        %394 = vmatpush.msra.mxu0 0.0
        %395 = vmatpush.msra.mxu0 0.0
        %396 = vmatpush.msra.mxu0 0.0
        %397 = vmatpush.msra.mxu0 0.0
        %398 = vmatpush.msra.mxu0 0.0
        %399 = vmatpush.msra.mxu0 %v275
        %400 = vmatmul.f32.gmra.mxu0 %v379
        %v401 = vpop.f32.mrf.mxu0
        %v402 = vadd.f32 0.0, %v401
        %403 = vmatmul.f32.gmra.mxu0 %v382
        %v404 = vpop.f32.mrf.mxu0
        %v405 = vadd.f32 0.0, %v404
        %406 = vdwg.mxu0
        %407 = vst.msk [vmem:[%s272] sm:$0xff] %vm284, %v402
        %408 = vst.msk [vmem:[%s272 + $0x8] sm:$0xff] %vm284, %v405
        %s409 = sand.u32 %s126, 1
        %s410 = scalar_lea.sflag [#allocation4], %s409
        %s411 = sand.u32 %s126, 1
        %s412 = smul.addr %s411, 16
        %s413 = scalar_lea.vmem [#allocation8], %s412
        // Predicated region
        $region49: #{tpu_custom_call.1} parent=35 // pred_check
          %p414 = pneg %p136
        $region50: #{tpu_custom_call.1} parent=35 // pred_check_branch
          %416 = sbr.rel (%p414) target = $region52
        $region51: #{tpu_custom_call.1} parent=35 // pred_region
          %418 = vsyncadd %s410, 0
          %s419 = smul.addr %s24, 2
          %s420 = smul.addr %s419, 8
          %s421 = scalar_lea.hbm %s4, %s420
          %s422 = sshll.u32 %s413, 4
          %s423 = int_to_ptr.vmem [resolvable:$true] %s422
          %s424 = sshll.u32 %s421, 4
          %s425 = int_to_ptr.hbm [resolvable:$true] %s424
          %430 = dma.vmem_to_hbm [thread:$0]  %s423, 256, %s425, %s410, 128, 128, 8
        $region52: #{tpu_custom_call.1} parent=35 // pred_fallthru
          _
      $region36: #{tpu_custom_call.1} parent=5 // pred_fallthru
        _
      %p431 = scmp.le.s32.totalorder 2, %s19
      // Predicated region
      $region53: #{tpu_custom_call.1} parent=5 // pred_check
        %p432 = pneg %p431
      $region54: #{tpu_custom_call.1} parent=5 // pred_check_branch
        %434 = sbr.rel (%p432) target = $region56
      $region55: #{tpu_custom_call.1} parent=5 // pred_region
        %s435 = ssub.s32 %s19, 2
        // Predicated region
        $region57: #{tpu_custom_call.1} parent=55 // pred_check
          %p436 = pneg %p142
        $region58: #{tpu_custom_call.1} parent=55 // pred_check_branch
          %438 = sbr.rel (%p436) target = $region60
        $region59: #{tpu_custom_call.1} parent=55 // pred_region
          %s439 = sand.u32 %s127, 1
          %s440 = scalar_lea.sflag [#allocation4], %s439
          %s441 = sand.u32 %s127, 1
          %s442 = smul.addr %s441, 16
          %s443 = scalar_lea.vmem [#allocation8], %s442
          %445 = dma.done %s440, 256
        $region60: #{tpu_custom_call.1} parent=55 // pred_fallthru
          _
      $region56: #{tpu_custom_call.1} parent=5 // pred_fallthru
        _
    $region6: #{tpu_custom_call.1} parent=1 // loop_footer
      %s23 = sadd.s32 1, %s19
    $region7: #{tpu_custom_call.1} parent=1 // loop_footer_branch
      %18 = sbr.rel target = $region3
    $region8: #{tpu_custom_call.1} parent=1 // loop_exit
      _
    %446 = vsyncpa [#allocation3], 1
    %s447 = scalar_lea.sflag [#allocation3], 1
    %448 = vsyncpa %s447, 1
    %449 = vsyncpa [#allocation6], 1
    %s450 = scalar_lea.sflag [#allocation6], 1
    %451 = vsyncpa %s450, 1
    %452 = vsyncpa [#allocation4], 1
    %s453 = scalar_lea.sflag [#allocation4], 1
    %454 = vsyncpa %s453, 1

</llo_original>
